<compile_context>
chip_gen: v7x
topology: tpu7x:2x2x1
jax: 0.10.0
libtpu: 0.0.40
codegen_flags: <defaults>
</compile_context>

<pallas_src>
import functools

import jax
import jax.numpy as jnp
from jax.experimental import pallas as pl
from jax.experimental.pallas import tpu as pltpu

LANE = 128
SUBLANE = 8

G_M = 0.1        # fixed in the PyTorch module
DELTA_T = 0.5    # fixed in the PyTorch module (power of two -> exact reciprocal)


def _round_up(x, m):
    return (x + m - 1) // m * m


# ---------------------------------------------------------------------------
# Kernel: one (row_block, timestep) grid point.
# ---------------------------------------------------------------------------
def _aeif_kernel(refrac,
                 inp_ref,                                            # (TR,128) this step's input
                 thr_ref, vrst_ref, dtcm_ref, dttw_ref, aad_ref, bad_ref,  # per-neuron params
                 mem_in, ad_in, ref_in,                              # initial state (read at t==0)
                 spike_out,                                          # (TR,128) this step's spikes
                 mem_out, ad_out, ref_out):                          # VMEM-resident state accumulators
    t = pl.program_id(1)

    # Seed the VMEM-resident state (output blocks are constant over the time axis,
    # so they stay in VMEM for the whole row block and write back to HBM only once).
    @pl.when(t == 0)
    def _():
        mem_out[...] = mem_in[...]
        ad_out[...] = ad_in[...]
        ref_out[...] = ref_in[...]

    inputs = inp_ref[...]
    mem = mem_out[...]
    ad = ad_out[...]
    refc = ref_out[...]
    thr = thr_ref[...]
    v_reset = vrst_ref[...]
    dt_over_cm = dtcm_ref[...]     # dt / c_m   (precomputed once in the wrapper)
    dt_over_tw = dttw_ref[...]     # dt / tau_w (precomputed once in the wrapper)
    alpha_ad = aad_ref[...]
    beta_ad = bad_ref[...]

    # --- integral() ---
    not_refrac = (refc > refrac).astype(jnp.float32)
    dmem = dt_over_cm * (-G_M * (mem - v_reset)
                         + (G_M * DELTA_T) * jnp.exp((mem - thr) * (1.0 / DELTA_T))
                         + alpha_ad * ad
                         + inputs)
    mem = mem + not_refrac * dmem
    ad = ad + not_refrac * (dt_over_tw * (-ad + beta_ad * (mem - v_reset)))

    # --- calc_spike() ---
    spike = (mem > thr).astype(jnp.float32)
    refc = refc * (1.0 - spike) + 1.0
    ad = ad + spike * 30.0
    mem = spike * v_reset + (1.0 - spike) * mem

    spike_out[...] = spike
    mem_out[...] = mem
    ad_out[...] = ad
    ref_out[...] = refc


# ---------------------------------------------------------------------------
# Tiling selection: sublane-dense (rows, 128) layout; guarantee >=2 row blocks
# whenever possible so v7x's two TensorCores both get work.
# ---------------------------------------------------------------------------
def aeif_choose_tiling(n, tile_rows=1024):
    rows = -(-n // LANE)
    rows8 = _round_up(rows, SUBLANE)
    tr = _round_up(max(min(int(tile_rows), rows8), SUBLANE), SUBLANE)
    if rows8 >= 2 * SUBLANE:
        tr = min(tr, max((rows8 // 2) // SUBLANE * SUBLANE, SUBLANE))
    rows_pad = _round_up(rows8, tr)
    return tr, rows_pad


# ---------------------------------------------------------------------------
# Fused multi-timestep call on the padded (rows_pad, 128) layout.
# Long simulations should keep state/params in this layout and call this directly.
# ---------------------------------------------------------------------------
@functools.partial(jax.jit,
                   static_argnames=("dt", "tile_rows"),
                   donate_argnames=("mem", "ad", "refc"))
def aeif_multistep_padded(inputs, mem, ad, refc,
                          threshold, v_reset, dt_over_cm, dt_over_tw,
                          alpha_ad, beta_ad, *, dt=1.0, tile_rows=8):
    """Run T consecutive aEIF steps.

    inputs: (T, rows_pad, 128) f32; all other args: (rows_pad, 128) f32.
    tile_rows must divide rows_pad (use aeif_choose_tiling).
    Returns (spikes (T, rows_pad, 128), mem, ad, refc) in the padded layout.
    """
    T, rows_pad, lane = inputs.shape
    tr = int(tile_rows)
    assert lane == LANE and rows_pad % tr == 0 and tr % SUBLANE == 0
    refrac = 5.0 / dt
    n_pad = rows_pad * LANE
    grid = (rows_pad // tr, T)

    # Per-step blocks (leading T dim squeezed away in the kernel).
    step_spec = pl.BlockSpec((None, tr, LANE), lambda i, t: (t, i, 0))
    # Time-invariant blocks: index_map constant over t -> DMA'd once per row block.
    resident_spec = pl.BlockSpec((tr, LANE), lambda i, t: (i, 0))

    block_bytes = tr * LANE * 4
    # 14 streamed arrays, double buffered, plus slack; keep within every chip's
    # scoped-VMEM budget (v5e default 16 MiB; v7x physical 64 MiB).
    vmem_limit = int(min(max(14 * 2 * block_bytes + (2 << 20), 8 << 20), 32 << 20))

    cost = pl.CostEstimate(
        flops=25 * T * n_pad,
        transcendentals=T * n_pad,
        bytes_accessed=(2 * T * n_pad + 6 * n_pad + 2 * 3 * n_pad) * 4,
    )

    kernel = functools.partial(_aeif_kernel, refrac)

    # pallas_call argument order (positional): see the call below.
    #   0: inputs, 1..6: params, 7: mem, 8: ad, 9: refc
    # outputs: 0: spikes, 1: mem, 2: ad, 3: refc
    state_in_start = 7
    io_aliases = {state_in_start + k: 1 + k for k in range(3)}

    spikes, mem, ad, refc = pl.pallas_call(
        kernel,
        grid=grid,
        in_specs=[step_spec] + [resident_spec] * 9,
        out_specs=[step_spec, resident_spec, resident_spec, resident_spec],
        out_shape=[jax.ShapeDtypeStruct((T, rows_pad, LANE), jnp.float32),
                   jax.ShapeDtypeStruct((rows_pad, LANE), jnp.float32),
                   jax.ShapeDtypeStruct((rows_pad, LANE), jnp.float32),
                   jax.ShapeDtypeStruct((rows_pad, LANE), jnp.float32)],
        input_output_aliases=io_aliases,
        compiler_params=pltpu.CompilerParams(
            dimension_semantics=("parallel", "arbitrary"),
            vmem_limit_bytes=vmem_limit),
        cost_estimate=cost,
    )(inputs, threshold, v_reset, dt_over_cm, dt_over_tw, alpha_ad, beta_ad,
      mem, ad, refc)

    return spikes, mem, ad, refc


# ---------------------------------------------------------------------------
# Boundary wrapper: unpadded (T, N) inputs and (N,) state/params.
# Pad/reshape happens once per T-step call (not once per step).
# ---------------------------------------------------------------------------
def aeif_forward_steps(inputs_tn, mem, ad, refc,
                       threshold, v_reset, c_m, tau_w, alpha_ad, beta_ad,
                       *, dt=1.0, tile_rows=1024):
    inputs_tn = jnp.asarray(inputs_tn, jnp.float32)
    T, n = inputs_tn.shape
    tr, rows_pad = aeif_choose_tiling(n, tile_rows)
    n_pad = rows_pad * LANE

    def prep(x):
        x = jnp.asarray(x, jnp.float32).reshape(-1)
        if n_pad != n:
            x = jnp.pad(x, (0, n_pad - n))
        return x.reshape(rows_pad, LANE)

    # Hoist the per-neuron divides out of the kernel (done once, exact f32 division).
    dt_over_cm = dt / jnp.asarray(c_m, jnp.float32)
    dt_over_tw = dt / jnp.asarray(tau_w, jnp.float32)

    inp3 = jnp.pad(inputs_tn, ((0, 0), (0, n_pad - n))).reshape(T, rows_pad, LANE)

    spikes_p, mem_p, ad_p, ref_p = aeif_multistep_padded(
        inp3, prep(mem), prep(ad), prep(refc),
        prep(threshold), prep(v_reset), prep(dt_over_cm), prep(dt_over_tw),
        prep(alpha_ad), prep(beta_ad),
        dt=dt, tile_rows=tr)

    spikes = spikes_p.reshape(T, n_pad)[:, :n]
    unpad = lambda x: x.reshape(n_pad)[:n]
    return spikes, unpad(mem_p), unpad(ad_p), unpad(ref_p)


# ---------------------------------------------------------------------------
# Pure-JAX reference mirroring the PyTorch module exactly (one step).
# ---------------------------------------------------------------------------
def aeif_reference_step(inputs, mem, ad, refc,
                        threshold, v_reset, c_m, tau_w, alpha_ad, beta_ad, *, dt=1.0):
    g_m = 0.1
    delta_t = 0.5
    refrac = 5.0 / dt
    not_refrac = (refc > refrac).astype(jnp.float32)
    mem = mem + not_refrac * (dt / c_m) * (
        -g_m * (mem - v_reset)
        + g_m * delta_t * jnp.exp((mem - threshold) / delta_t)
        + alpha_ad * ad
        + inputs)
    ad = ad + not_refrac * (dt / tau_w) * (-ad + beta_ad * (mem - v_reset))
    spike = (mem > threshold).astype(jnp.float32)
    refc = refc * (1.0 - spike) + 1.0
    ad = ad + spike * 30.0
    mem = spike * v_reset + (1.0 - spike) * mem
    return spike, mem, ad, refc


if __name__ == "__main__":
    # Deterministic small setup: N deliberately not a multiple of 128 (padding path),
    # T = 8 timesteps (the module's default `step`), and initial ref counters spread
    # across [0, refrac+3] so refractory / integrating / spiking branches are all hit.
    N = 2000
    T = 8
    dt = 1.0
    refrac = 5.0 / dt

    key = jax.random.PRNGKey(0)
    k_inp, k_ref = jax.random.split(key, 2)

    # Parameters p = [threshold, v_reset, c_m, tao_w, alpha_ad, beta_ad], per-neuron.
    threshold = jnp.full((N,), 0.5, dtype=jnp.float32)
    v_reset = jnp.zeros((N,), dtype=jnp.float32)
    c_m = jnp.full((N,), 10.0, dtype=jnp.float32)
    tau_w = jnp.full((N,), 30.0, dtype=jnp.float32)
    alpha_ad = jnp.full((N,), 0.1, dtype=jnp.float32)
    beta_ad = jnp.full((N,), 0.05, dtype=jnp.float32)

    # State: mem = v_reset, ad = 0, ref random.
    mem0 = v_reset
    ad0 = jnp.zeros((N,), dtype=jnp.float32)
    ref0 = jax.random.randint(k_ref, (N,), 0, int(refrac) + 4).astype(jnp.float32)

    # Synaptic input current for each step.
    inputs = 20.0 * jax.random.normal(k_inp, (T, N), dtype=jnp.float32)

    spikes, mem, ad, refc = aeif_forward_steps(
        inputs, mem0, ad0, ref0,
        threshold, v_reset, c_m, tau_w, alpha_ad, beta_ad,
        dt=dt, tile_rows=1024)
    jax.block_until_ready((spikes, mem, ad, refc))

    # Cross-check against the pure-JAX reference of the PyTorch semantics, step by step.
    r_mem, r_ad, r_ref = mem0, ad0, ref0
    r_spikes = []
    for t in range(T):
        r_s, r_mem, r_ad, r_ref = aeif_reference_step(
            inputs[t], r_mem, r_ad, r_ref,
            threshold, v_reset, c_m, tau_w, alpha_ad, beta_ad, dt=dt)
        r_spikes.append(r_s)
    r_spikes = jnp.stack(r_spikes)

    assert jnp.array_equal(spikes, r_spikes), "spike mismatch"
    assert jnp.allclose(mem, r_mem, atol=1e-5), "mem mismatch"
    assert jnp.allclose(ad, r_ad, atol=1e-5), "ad mismatch"
    assert jnp.allclose(refc, r_ref, atol=1e-5), "ref mismatch"
    assert float(jnp.sum(spikes)) > 0.0, "expected at least one spike in test setup"

    print("KERNEL_OK")
</pallas_src>

<mosaic_0001>
module attributes {stable_mosaic.version = 11 : i64} {
  func.func @_aeif_kernel(%arg0: i32, %arg1: i32, %arg2: memref<1x8x128xf32, #tpu.memory_space<vmem>>, %arg3: memref<8x128xf32, #tpu.memory_space<vmem>>, %arg4: memref<8x128xf32, #tpu.memory_space<vmem>>, %arg5: memref<8x128xf32, #tpu.memory_space<vmem>>, %arg6: memref<8x128xf32, #tpu.memory_space<vmem>>, %arg7: memref<8x128xf32, #tpu.memory_space<vmem>>, %arg8: memref<8x128xf32, #tpu.memory_space<vmem>>, %arg9: memref<8x128xf32, #tpu.memory_space<vmem>>, %arg10: memref<8x128xf32, #tpu.memory_space<vmem>>, %arg11: memref<8x128xf32, #tpu.memory_space<vmem>>, %arg12: memref<1x8x128xf32, #tpu.memory_space<vmem>>, %arg13: memref<8x128xf32, #tpu.memory_space<vmem>>, %arg14: memref<8x128xf32, #tpu.memory_space<vmem>>, %arg15: memref<8x128xf32, #tpu.memory_space<vmem>>) attributes {dimension_semantics = [#tpu.dimension_semantics<parallel>, #tpu.dimension_semantics<arbitrary>], iteration_bounds = array<i64: 2, 8>, scalar_prefetch = 0 : i64, scratch_operands = 0 : i64, tpu.core_type = #tpu.core_type<tc>, window_params = [{transform_indices = @transform_0, window_bounds = array<i64: 1, 8, 128>}, {transform_indices = @transform_1, window_bounds = array<i64: 8, 128>}, {transform_indices = @transform_2, window_bounds = array<i64: 8, 128>}, {transform_indices = @transform_3, window_bounds = array<i64: 8, 128>}, {transform_indices = @transform_4, window_bounds = array<i64: 8, 128>}, {transform_indices = @transform_5, window_bounds = array<i64: 8, 128>}, {transform_indices = @transform_6, window_bounds = array<i64: 8, 128>}, {transform_indices = @transform_7, window_bounds = array<i64: 8, 128>}, {transform_indices = @transform_8, window_bounds = array<i64: 8, 128>}, {transform_indices = @transform_9, window_bounds = array<i64: 8, 128>}, {transform_indices = @transform_10, window_bounds = array<i64: 1, 8, 128>}, {transform_indices = @transform_11, window_bounds = array<i64: 8, 128>}, {transform_indices = @transform_12, window_bounds = array<i64: 8, 128>}, {transform_indices = @transform_13, window_bounds = array<i64: 8, 128>}]} {
    %c0_i32 = arith.constant 0 : i32
    %0 = arith.cmpi eq, %arg1, %c0_i32 : i32
    %1 = arith.extui %0 : i1 to i32
    %c0_i32_0 = arith.constant 0 : i32
    %2 = arith.cmpi ne, %1, %c0_i32_0 : i32
    scf.if %2 {
      %c0_38 = arith.constant 0 : index
      %c0_39 = arith.constant 0 : index
      %64 = vector.load %arg9[%c0_38, %c0_39] : memref<8x128xf32, #tpu.memory_space<vmem>>, vector<8x128xf32>
      %c0_40 = arith.constant 0 : index
      %c0_41 = arith.constant 0 : index
      %65 = vector.load %arg13[%c0_40, %c0_41] : memref<8x128xf32, #tpu.memory_space<vmem>>, vector<8x128xf32>
      tpu.vector_store %arg13[%c0_40, %c0_41], %64 {strides = array<i32>} : memref<8x128xf32, #tpu.memory_space<vmem>>, vector<8x128xf32>,
      %c0_42 = arith.constant 0 : index
      %c0_43 = arith.constant 0 : index
      %66 = vector.load %arg10[%c0_42, %c0_43] : memref<8x128xf32, #tpu.memory_space<vmem>>, vector<8x128xf32>
      %c0_44 = arith.constant 0 : index
      %c0_45 = arith.constant 0 : index
      %67 = vector.load %arg14[%c0_44, %c0_45] : memref<8x128xf32, #tpu.memory_space<vmem>>, vector<8x128xf32>
      tpu.vector_store %arg14[%c0_44, %c0_45], %66 {strides = array<i32>} : memref<8x128xf32, #tpu.memory_space<vmem>>, vector<8x128xf32>,
      %c0_46 = arith.constant 0 : index
      %c0_47 = arith.constant 0 : index
      %68 = vector.load %arg11[%c0_46, %c0_47] : memref<8x128xf32, #tpu.memory_space<vmem>>, vector<8x128xf32>
      %c0_48 = arith.constant 0 : index
      %c0_49 = arith.constant 0 : index
      %69 = vector.load %arg15[%c0_48, %c0_49] : memref<8x128xf32, #tpu.memory_space<vmem>>, vector<8x128xf32>
      tpu.vector_store %arg15[%c0_48, %c0_49], %68 {strides = array<i32>} : memref<8x128xf32, #tpu.memory_space<vmem>>, vector<8x128xf32>,
    } else {
    }
    %c0 = arith.constant 0 : index
    %c0_1 = arith.constant 0 : index
    %c0_2 = arith.constant 0 : index
    %3 = vector.load %arg2[%c0, %c0_1, %c0_2] : memref<1x8x128xf32, #tpu.memory_space<vmem>>, vector<1x8x128xf32>
    %4 = vector.shape_cast %3 : vector<1x8x128xf32> to vector<8x128xf32>
    %c0_3 = arith.constant 0 : index
    %c0_4 = arith.constant 0 : index
    %5 = vector.load %arg13[%c0_3, %c0_4] : memref<8x128xf32, #tpu.memory_space<vmem>>, vector<8x128xf32>
    %c0_5 = arith.constant 0 : index
    %c0_6 = arith.constant 0 : index
    %6 = vector.load %arg14[%c0_5, %c0_6] : memref<8x128xf32, #tpu.memory_space<vmem>>, vector<8x128xf32>
    %c0_7 = arith.constant 0 : index
    %c0_8 = arith.constant 0 : index
    %7 = vector.load %arg15[%c0_7, %c0_8] : memref<8x128xf32, #tpu.memory_space<vmem>>, vector<8x128xf32>
    %c0_9 = arith.constant 0 : index
    %c0_10 = arith.constant 0 : index
    %8 = vector.load %arg3[%c0_9, %c0_10] : memref<8x128xf32, #tpu.memory_space<vmem>>, vector<8x128xf32>
    %c0_11 = arith.constant 0 : index
    %c0_12 = arith.constant 0 : index
    %9 = vector.load %arg4[%c0_11, %c0_12] : memref<8x128xf32, #tpu.memory_space<vmem>>, vector<8x128xf32>
    %c0_13 = arith.constant 0 : index
    %c0_14 = arith.constant 0 : index
    %10 = vector.load %arg5[%c0_13, %c0_14] : memref<8x128xf32, #tpu.memory_space<vmem>>, vector<8x128xf32>
    %c0_15 = arith.constant 0 : index
    %c0_16 = arith.constant 0 : index
    %11 = vector.load %arg6[%c0_15, %c0_16] : memref<8x128xf32, #tpu.memory_space<vmem>>, vector<8x128xf32>
    %c0_17 = arith.constant 0 : index
    %c0_18 = arith.constant 0 : index
    %12 = vector.load %arg7[%c0_17, %c0_18] : memref<8x128xf32, #tpu.memory_space<vmem>>, vector<8x128xf32>
    %c0_19 = arith.constant 0 : index
    %c0_20 = arith.constant 0 : index
    %13 = vector.load %arg8[%c0_19, %c0_20] : memref<8x128xf32, #tpu.memory_space<vmem>>, vector<8x128xf32>
    %cst = arith.constant 5.000000e+00 : f32
    %14 = vector.broadcast %cst : f32 to vector<8x128xf32>
    %15 = arith.cmpf ogt, %7, %14 : vector<8x128xf32>
    %16 = arith.extui %15 : vector<8x128xi1> to vector<8x128xi32>
    %17 = arith.sitofp %16 : vector<8x128xi32> to vector<8x128xf32>
    %18 = arith.subf %5, %9 : vector<8x128xf32>
    %cst_21 = arith.constant -1.000000e-01 : f32
    %19 = vector.broadcast %cst_21 : f32 to vector<8x128xf32>
    %20 = arith.mulf %19, %18 : vector<8x128xf32>
    %21 = arith.subf %5, %8 : vector<8x128xf32>
    %cst_22 = arith.constant 2.000000e+00 : f32
    %22 = vector.broadcast %cst_22 : f32 to vector<8x128xf32>
    %23 = arith.mulf %21, %22 : vector<8x128xf32>
    %24 = math.exp %23 : vector<8x128xf32>
    %cst_23 = arith.constant 5.000000e-02 : f32
    %25 = vector.broadcast %cst_23 : f32 to vector<8x128xf32>
    %26 = arith.mulf %25, %24 : vector<8x128xf32>
    %27 = arith.addf %20, %26 : vector<8x128xf32>
    %28 = arith.mulf %12, %6 : vector<8x128xf32>
    %29 = arith.addf %27, %28 : vector<8x128xf32>
    %30 = arith.addf %29, %4 : vector<8x128xf32>
    %31 = arith.mulf %10, %30 : vector<8x128xf32>
    %32 = arith.mulf %17, %31 : vector<8x128xf32>
    %33 = arith.addf %5, %32 : vector<8x128xf32>
    %cst_24 = arith.constant 0.000000e+00 : f32
    %34 = vector.broadcast %cst_24 : f32 to vector<8x128xf32>
    %35 = arith.subf %34, %6 : vector<8x128xf32>
    %36 = arith.subf %33, %9 : vector<8x128xf32>
    %37 = arith.mulf %13, %36 : vector<8x128xf32>
    %38 = arith.addf %35, %37 : vector<8x128xf32>
    %39 = arith.mulf %11, %38 : vector<8x128xf32>
    %40 = arith.mulf %17, %39 : vector<8x128xf32>
    %41 = arith.addf %6, %40 : vector<8x128xf32>
    %42 = arith.cmpf ogt, %33, %8 : vector<8x128xf32>
    %43 = arith.extui %42 : vector<8x128xi1> to vector<8x128xi32>
    %44 = arith.sitofp %43 : vector<8x128xi32> to vector<8x128xf32>
    %cst_25 = arith.constant 1.000000e+00 : f32
    %45 = vector.broadcast %cst_25 : f32 to vector<8x128xf32>
    %46 = arith.subf %45, %44 : vector<8x128xf32>
    %47 = arith.mulf %7, %46 : vector<8x128xf32>
    %cst_26 = arith.constant 1.000000e+00 : f32
    %48 = vector.broadcast %cst_26 : f32 to vector<8x128xf32>
    %49 = arith.addf %47, %48 : vector<8x128xf32>
    %cst_27 = arith.constant 3.000000e+01 : f32
    %50 = vector.broadcast %cst_27 : f32 to vector<8x128xf32>
    %51 = arith.mulf %44, %50 : vector<8x128xf32>
    %52 = arith.addf %41, %51 : vector<8x128xf32>
    %53 = arith.mulf %44, %9 : vector<8x128xf32>
    %cst_28 = arith.constant 1.000000e+00 : f32
    %54 = vector.broadcast %cst_28 : f32 to vector<8x128xf32>
    %55 = arith.subf %54, %44 : vector<8x128xf32>
    %56 = arith.mulf %55, %33 : vector<8x128xf32>
    %57 = arith.addf %53, %56 : vector<8x128xf32>
    %c0_29 = arith.constant 0 : index
    %c0_30 = arith.constant 0 : index
    %c0_31 = arith.constant 0 : index
    %58 = vector.load %arg12[%c0_29, %c0_30, %c0_31] : memref<1x8x128xf32, #tpu.memory_space<vmem>>, vector<1x8x128xf32>
    %59 = vector.shape_cast %58 : vector<1x8x128xf32> to vector<8x128xf32>
    %60 = vector.shape_cast %44 : vector<8x128xf32> to vector<1x8x128xf32>
    tpu.vector_store %arg12[%c0_29, %c0_30, %c0_31], %60 {strides = array<i32>} : memref<1x8x128xf32, #tpu.memory_space<vmem>>, vector<1x8x128xf32>,
    %c0_32 = arith.constant 0 : index
    %c0_33 = arith.constant 0 : index
    %61 = vector.load %arg13[%c0_32, %c0_33] : memref<8x128xf32, #tpu.memory_space<vmem>>, vector<8x128xf32>
    tpu.vector_store %arg13[%c0_32, %c0_33], %57 {strides = array<i32>} : memref<8x128xf32, #tpu.memory_space<vmem>>, vector<8x128xf32>,
    %c0_34 = arith.constant 0 : index
    %c0_35 = arith.constant 0 : index
    %62 = vector.load %arg14[%c0_34, %c0_35] : memref<8x128xf32, #tpu.memory_space<vmem>>, vector<8x128xf32>
    tpu.vector_store %arg14[%c0_34, %c0_35], %52 {strides = array<i32>} : memref<8x128xf32, #tpu.memory_space<vmem>>, vector<8x128xf32>,
    %c0_36 = arith.constant 0 : index
    %c0_37 = arith.constant 0 : index
    %63 = vector.load %arg15[%c0_36, %c0_37] : memref<8x128xf32, #tpu.memory_space<vmem>>, vector<8x128xf32>
    tpu.vector_store %arg15[%c0_36, %c0_37], %49 {strides = array<i32>} : memref<8x128xf32, #tpu.memory_space<vmem>>, vector<8x128xf32>,
    return
  }
  func.func @transform_0(%arg0: i32, %arg1: i32) -> (i32, i32, i32) {
    %c0_i32 = arith.constant 0 : i32
    %c0_i32_0 = arith.constant 0 : i32
    return %arg1, %arg0, %c0_i32 : i32, i32, i32
  }
  func.func @transform_1(%arg0: i32, %arg1: i32) -> (i32, i32) {
    %c0_i32 = arith.constant 0 : i32
    %c0_i32_0 = arith.constant 0 : i32
    return %arg0, %c0_i32 : i32, i32
  }
  func.func @transform_2(%arg0: i32, %arg1: i32) -> (i32, i32) {
    %c0_i32 = arith.constant 0 : i32
    %c0_i32_0 = arith.constant 0 : i32
    return %arg0, %c0_i32 : i32, i32
  }
  func.func @transform_3(%arg0: i32, %arg1: i32) -> (i32, i32) {
    %c0_i32 = arith.constant 0 : i32
    %c0_i32_0 = arith.constant 0 : i32
    return %arg0, %c0_i32 : i32, i32
  }
  func.func @transform_4(%arg0: i32, %arg1: i32) -> (i32, i32) {
    %c0_i32 = arith.constant 0 : i32
    %c0_i32_0 = arith.constant 0 : i32
    return %arg0, %c0_i32 : i32, i32
  }
  func.func @transform_5(%arg0: i32, %arg1: i32) -> (i32, i32) {
    %c0_i32 = arith.constant 0 : i32
    %c0_i32_0 = arith.constant 0 : i32
    return %arg0, %c0_i32 : i32, i32
  }
  func.func @transform_6(%arg0: i32, %arg1: i32) -> (i32, i32) {
    %c0_i32 = arith.constant 0 : i32
    %c0_i32_0 = arith.constant 0 : i32
    return %arg0, %c0_i32 : i32, i32
  }
  func.func @transform_7(%arg0: i32, %arg1: i32) -> (i32, i32) {
    %c0_i32 = arith.constant 0 : i32
    %c0_i32_0 = arith.constant 0 : i32
    return %arg0, %c0_i32 : i32, i32
  }
  func.func @transform_8(%arg0: i32, %arg1: i32) -> (i32, i32) {
    %c0_i32 = arith.constant 0 : i32
    %c0_i32_0 = arith.constant 0 : i32
    return %arg0, %c0_i32 : i32, i32
  }
  func.func @transform_9(%arg0: i32, %arg1: i32) -> (i32, i32) {
    %c0_i32 = arith.constant 0 : i32
    %c0_i32_0 = arith.constant 0 : i32
    return %arg0, %c0_i32 : i32, i32
  }
  func.func @transform_10(%arg0: i32, %arg1: i32) -> (i32, i32, i32) {
    %c0_i32 = arith.constant 0 : i32
    %c0_i32_0 = arith.constant 0 : i32
    return %arg1, %arg0, %c0_i32 : i32, i32, i32
  }
  func.func @transform_11(%arg0: i32, %arg1: i32) -> (i32, i32) {
    %c0_i32 = arith.constant 0 : i32
    %c0_i32_0 = arith.constant 0 : i32
    return %arg0, %c0_i32 : i32, i32
  }
  func.func @transform_12(%arg0: i32, %arg1: i32) -> (i32, i32) {
    %c0_i32 = arith.constant 0 : i32
    %c0_i32_0 = arith.constant 0 : i32
    return %arg0, %c0_i32 : i32, i32
  }
  func.func @transform_13(%arg0: i32, %arg1: i32) -> (i32, i32) {
    %c0_i32 = arith.constant 0 : i32
    %c0_i32_0 = arith.constant 0 : i32
    return %arg0, %c0_i32 : i32, i32
  }
}

</mosaic_0001>

<llo_original>
// kernel: aeif_multistep_padded.1
$region0: #{aeif_multistep_padded.1}
  #allocation0 [shape = 'u32[]', space=smem, size = 0x4, offset = 0x4, fixed_abs, tag = 'smem constant byte address 0x4 - core index']
  #allocation1 [shape = 'u32[144,128]{1,0:T(1,128)}', space=vmem, size = 0x12000, scoped, tag = 'internal scratch']
  %s0 = inlined_call_operand.hbm [shape: f32[8,16,128], index: 0, kind: input, shape index: {}]
  %s1 = inlined_call_operand.hbm [shape: f32[16,128], index: 1, kind: input, shape index: {}]
  %s2 = inlined_call_operand.vmem [shape: f32[16,128], index: 2, kind: input, shape index: {}]
  %s3 = inlined_call_operand.hbm [shape: f32[16,128], index: 3, kind: input, shape index: {}]
  %s4 = inlined_call_operand.hbm [shape: f32[16,128], index: 4, kind: input, shape index: {}]
  %s5 = inlined_call_operand.hbm [shape: f32[16,128], index: 5, kind: input, shape index: {}]
  %s6 = inlined_call_operand.vmem [shape: f32[16,128], index: 6, kind: input, shape index: {}]
  %s7 = inlined_call_operand.hbm [shape: f32[16,128], index: 7, kind: input, shape index: {}, may-alias: {7,11}]
  %s8 = inlined_call_operand.hbm [shape: f32[16,128], index: 8, kind: input, shape index: {}, may-alias: {8,12}]
  %s9 = inlined_call_operand.hbm [shape: f32[16,128], index: 9, kind: input, shape index: {}, may-alias: {9,13}]
  %s10 = inlined_call_operand.hbm [shape: f32[8,16,128], index: 10, kind: output, shape index: {0}]
  %s11 = inlined_call_operand.hbm [shape: f32[16,128], index: 11, kind: output, shape index: {1}, may-alias: {7,11}]
  %s12 = inlined_call_operand.hbm [shape: f32[16,128], index: 12, kind: output, shape index: {2}, may-alias: {8,12}]
  %s13 = inlined_call_operand.hbm [shape: f32[16,128], index: 13, kind: output, shape index: {3}, may-alias: {9,13}]
  %14 = xla_tuple %s10, %s11, %s12, %s13
  %s15 = sld [smem:[#allocation0]]
  $region133: #{aeif_multistep_padded.1} parent=0
    _
  %s17 = ssub.s32 1, %s15
  %s18 = scalar_select 0, %s17, %s15
  $region1: #{aeif_multistep_padded.1} parent=0
    #allocation2 [shape = 'u8[8192]{0}', space=vmem, size = 0x2000, scoped, tag = 'input window, operand 0']
    #allocation3 [shape = 's32[2]{0}', space=sflag, size = 0x8, scoped, tag = 'scoped memory for aeif_multistep_padded.1']
    #allocation4 [shape = 's32[2]{0}', space=sflag, size = 0x8, scoped, tag = 'scoped memory for aeif_multistep_padded.1']
    #allocation5 [shape = 'u8[8192]{0}', space=vmem, size = 0x2000, scoped, tag = 'input window, operand 1']
    #allocation6 [shape = 's32[2]{0}', space=sflag, size = 0x8, scoped, tag = 'scoped memory for aeif_multistep_padded.1']
    #allocation7 [shape = 'u8[8192]{0}', space=vmem, size = 0x2000, scoped, tag = 'input window, operand 3']
    #allocation8 [shape = 'u8[8192]{0}', space=vmem, size = 0x2000, scoped, tag = 'input window, operand 4']
    #allocation9 [shape = 's32[2]{0}', space=sflag, size = 0x8, scoped, tag = 'scoped memory for aeif_multistep_padded.1']
    #allocation10 [shape = 'u8[8192]{0}', space=vmem, size = 0x2000, scoped, tag = 'input window, operand 5']
    #allocation11 [shape = 'u8[8192]{0}', space=vmem, size = 0x2000, scoped, tag = 'input window, operand 7']
    #allocation12 [shape = 's32[2]{0}', space=sflag, size = 0x8, scoped, tag = 'scoped memory for aeif_multistep_padded.1']
    #allocation13 [shape = 'u8[8192]{0}', space=vmem, size = 0x2000, scoped, tag = 'input window, operand 8']
    #allocation14 [shape = 'u8[8192]{0}', space=vmem, size = 0x2000, scoped, tag = 'input window, operand 9']
    #allocation15 [shape = 's32[2]{0}', space=sflag, size = 0x8, scoped, tag = 'scoped memory for aeif_multistep_padded.1']
    #allocation16 [shape = 'u8[8192]{0}', space=vmem, size = 0x2000, scoped, tag = 'output window, operand 0']
    #allocation17 [shape = 'u8[8192]{0}', space=vmem, size = 0x2000, scoped, tag = 'output window, operand 1']
    #allocation18 [shape = 's32[2]{0}', space=sflag, size = 0x8, scoped, tag = 'scoped memory for aeif_multistep_padded.1']
    #allocation19 [shape = 'u8[8192]{0}', space=vmem, size = 0x2000, scoped, tag = 'output window, operand 2']
    #allocation20 [shape = 'u8[8192]{0}', space=vmem, size = 0x2000, scoped, tag = 'output window, operand 3']
    #allocation21 [shape = 's32[2]{0}', space=sflag, size = 0x8, scoped, tag = 'scoped memory for aeif_multistep_padded.1']
    %19 = vsyncpa [#allocation3], 0
    %s20 = scalar_lea.sflag [#allocation3], 1
    %21 = vsyncpa %s20, 0
    %22 = vsyncpa [#allocation6], 0
    %s23 = scalar_lea.sflag [#allocation6], 1
    %24 = vsyncpa %s23, 0
    %25 = vsyncpa [#allocation9], 0
    %s26 = scalar_lea.sflag [#allocation9], 1
    %27 = vsyncpa %s26, 0
    %28 = vsyncpa [#allocation12], 0
    %s29 = scalar_lea.sflag [#allocation12], 1
    %30 = vsyncpa %s29, 0
    %31 = vsyncpa [#allocation15], 0
    %s32 = scalar_lea.sflag [#allocation15], 1
    %33 = vsyncpa %s32, 0
    %34 = vsyncpa [#allocation4], 0
    %s35 = scalar_lea.sflag [#allocation4], 1
    %36 = vsyncpa %s35, 0
    %37 = vsyncpa [#allocation18], 0
    %s38 = scalar_lea.sflag [#allocation18], 1
    %39 = vsyncpa %s38, 0
    %40 = vsyncpa [#allocation21], 0
    %s41 = scalar_lea.sflag [#allocation21], 1
    %42 = vsyncpa %s41, 0
    loop: start=0, step=1, limit=18
    $region2: #{aeif_multistep_padded.1} parent=1 // loop_pre_header
      _
    $region3: #{aeif_multistep_padded.1} parent=1 // loop_header
      %s44 = sphi 0, %s48
      %p45 = scmp.ge.s32.totalorder %s44, 18
      %s51 = sphi 0, %s63
      %s52 = sphi 0, %s59
      %s53 = sphi 0, %s51
      %s54 = sphi 0, %s52
      %s55 = sphi 0, %s53
      %s56 = sphi 0, %s54
      %s68 = sphi 0, %s70
      %s71 = sphi 0, %s68
      %s72 = sphi 0, %s71
      %s88 = sphi 0, %s72
      %s94 = sphi 0, %s96
      %s97 = sphi 0, %s94
      %s98 = sphi 0, %s97
      %s114 = sphi 0, %s98
      %s120 = sphi 0, %s122
      %s123 = sphi 0, %s120
      %s124 = sphi 0, %s123
      %s140 = sphi 0, %s124
      %s146 = sphi 0, %s148
      %s149 = sphi 0, %s146
      %s150 = sphi 0, %s149
      %s166 = sphi 0, %s150
      %s172 = sphi 0, %s174
      %s175 = sphi 0, %s172
      %s176 = sphi 0, %s175
      %s192 = sphi 0, %s176
      %s198 = sphi 0, %s200
      %s201 = sphi 0, %s198
      %s202 = sphi 0, %s201
      %s218 = sphi 0, %s202
      %s224 = sphi 0, %s226
      %s227 = sphi 0, %s224
      %s228 = sphi 0, %s227
      %s244 = sphi 0, %s228
      %s250 = sphi 0, %s252
      %s253 = sphi 0, %s250
      %s254 = sphi 0, %s253
      %s270 = sphi 0, %s254
      %s276 = sphi 0, %s278
      %s279 = sphi 0, %s276
      %s280 = sphi 0, %s279
      %s296 = sphi 0, %s280
      %s302 = sphi 0, %s304
      %s305 = sphi 0, %s302
      %s306 = sphi 0, %s305
      %s322 = sphi 0, %s306
      %s330 = sphi 0, %s332
      %s333 = sphi 0, %s330
      %s334 = sphi 0, %s333
      %s350 = sphi 0, %s334
      %s356 = sphi 0, %s358
      %s359 = sphi 0, %s356
      %s360 = sphi 0, %s359
      %s376 = sphi 0, %s360
      %s382 = sphi 0, %s384
      %s385 = sphi 0, %s382
      %s386 = sphi 0, %s385
      %s402 = sphi 0, %s386
      %s408 = sphi 0, %s410
      %s411 = sphi 0, %s408
      %s412 = sphi 0, %s411
      %s428 = sphi 0, %s412
    $region4: #{aeif_multistep_padded.1} parent=1 // loop_header_branch
      %47 = sbr.rel (%p45) target = $region8
    $region5: #{aeif_multistep_padded.1} parent=1 // loop_body
      %s49 = ssub.s32 %s44, 1
      %s50 = ssub.s32 %s44, 2
      %s57 = sadd.s32 1, %s52
      %p58 = scmp.ge.s32.totalorder %s57, 8
      %s59 = scalar_select %p58, 0, %s57
      %s60 = sadd.s32 1, %s51
      %s61 = scalar_select %p58, %s60, %s51
      %p62 = scmp.ge.s32.totalorder %s61, 2
      %s63 = scalar_select %p62, 0, %s61
      %s64 = ssub.s32 %s52, %s59
      %s65 = ssub.s32 %s51, %s63
      %s66 = sor.u32 %s64, %s65
      %p67 = scmp.eq.s32.totalorder %s66, 0
      %s69 = sadd.s32 %s68, 1
      %s70 = scalar_select %p67, %s68, %s69
      %p73 = pneg %p67
      %p74 = scmp.eq.s32.totalorder %s44, 15
      %p75 = por %p73, %p74
      %p76 = scmp.ne.s32.totalorder %s68, %s71
      %p77 = scmp.eq.s32.totalorder %s44, 0
      %p78 = por %p76, %p77
      %p79 = scmp.ne.s32.totalorder %s68, %s71
      %p80 = scmp.eq.s32.totalorder %s49, 15
      %p81 = por %p79, %p80
      %p82 = scmp.ne.s32.totalorder %s71, %s72
      %p83 = scmp.eq.s32.totalorder %s49, 0
      %p84 = por %p82, %p83
      %p85 = scmp.ne.s32.totalorder %s71, %s72
      %p86 = scmp.eq.s32.totalorder %s50, 15
      %p87 = por %p85, %p86
      %p89 = scmp.ne.s32.totalorder %s72, %s88
      %p90 = scmp.eq.s32.totalorder %s50, 0
      %p91 = por %p89, %p90
      %s92 = ssub.s32 %s51, %s63
      %p93 = scmp.eq.s32.totalorder %s92, 0
      %s95 = sadd.s32 %s94, 1
      %s96 = scalar_select %p93, %s94, %s95
      %p99 = pneg %p93
      %p100 = scmp.eq.s32.totalorder %s44, 15
      %p101 = por %p99, %p100
      %p102 = scmp.ne.s32.totalorder %s94, %s97
      %p103 = scmp.eq.s32.totalorder %s44, 0
      %p104 = por %p102, %p103
      %p105 = scmp.ne.s32.totalorder %s94, %s97
      %p106 = scmp.eq.s32.totalorder %s49, 15
      %p107 = por %p105, %p106
      %p108 = scmp.ne.s32.totalorder %s97, %s98
      %p109 = scmp.eq.s32.totalorder %s49, 0
      %p110 = por %p108, %p109
      %p111 = scmp.ne.s32.totalorder %s97, %s98
      %p112 = scmp.eq.s32.totalorder %s50, 15
      %p113 = por %p111, %p112
      %p115 = scmp.ne.s32.totalorder %s98, %s114
      %p116 = scmp.eq.s32.totalorder %s50, 0
      %p117 = por %p115, %p116
      %s118 = ssub.s32 %s51, %s63
      %p119 = scmp.eq.s32.totalorder %s118, 0
      %s121 = sadd.s32 %s120, 1
      %s122 = scalar_select %p119, %s120, %s121
      %p125 = pneg %p119
      %p126 = scmp.eq.s32.totalorder %s44, 15
      %p127 = por %p125, %p126
      %p128 = scmp.ne.s32.totalorder %s120, %s123
      %p129 = scmp.eq.s32.totalorder %s44, 0
      %p130 = por %p128, %p129
      %p131 = scmp.ne.s32.totalorder %s120, %s123
      %p132 = scmp.eq.s32.totalorder %s49, 15
      %p133 = por %p131, %p132
      %p134 = scmp.ne.s32.totalorder %s123, %s124
      %p135 = scmp.eq.s32.totalorder %s49, 0
      %p136 = por %p134, %p135
      %p137 = scmp.ne.s32.totalorder %s123, %s124
      %p138 = scmp.eq.s32.totalorder %s50, 15
      %p139 = por %p137, %p138
      %p141 = scmp.ne.s32.totalorder %s124, %s140
      %p142 = scmp.eq.s32.totalorder %s50, 0
      %p143 = por %p141, %p142
      %s144 = ssub.s32 %s51, %s63
      %p145 = scmp.eq.s32.totalorder %s144, 0
      %s147 = sadd.s32 %s146, 1
      %s148 = scalar_select %p145, %s146, %s147
      %p151 = pneg %p145
      %p152 = scmp.eq.s32.totalorder %s44, 15
      %p153 = por %p151, %p152
      %p154 = scmp.ne.s32.totalorder %s146, %s149
      %p155 = scmp.eq.s32.totalorder %s44, 0
      %p156 = por %p154, %p155
      %p157 = scmp.ne.s32.totalorder %s146, %s149
      %p158 = scmp.eq.s32.totalorder %s49, 15
      %p159 = por %p157, %p158
      %p160 = scmp.ne.s32.totalorder %s149, %s150
      %p161 = scmp.eq.s32.totalorder %s49, 0
      %p162 = por %p160, %p161
      %p163 = scmp.ne.s32.totalorder %s149, %s150
      %p164 = scmp.eq.s32.totalorder %s50, 15
      %p165 = por %p163, %p164
      %p167 = scmp.ne.s32.totalorder %s150, %s166
      %p168 = scmp.eq.s32.totalorder %s50, 0
      %p169 = por %p167, %p168
      %s170 = ssub.s32 %s51, %s63
      %p171 = scmp.eq.s32.totalorder %s170, 0
      %s173 = sadd.s32 %s172, 1
      %s174 = scalar_select %p171, %s172, %s173
      %p177 = pneg %p171
      %p178 = scmp.eq.s32.totalorder %s44, 15
      %p179 = por %p177, %p178
      %p180 = scmp.ne.s32.totalorder %s172, %s175
      %p181 = scmp.eq.s32.totalorder %s44, 0
      %p182 = por %p180, %p181
      %p183 = scmp.ne.s32.totalorder %s172, %s175
      %p184 = scmp.eq.s32.totalorder %s49, 15
      %p185 = por %p183, %p184
      %p186 = scmp.ne.s32.totalorder %s175, %s176
      %p187 = scmp.eq.s32.totalorder %s49, 0
      %p188 = por %p186, %p187
      %p189 = scmp.ne.s32.totalorder %s175, %s176
      %p190 = scmp.eq.s32.totalorder %s50, 15
      %p191 = por %p189, %p190
      %p193 = scmp.ne.s32.totalorder %s176, %s192
      %p194 = scmp.eq.s32.totalorder %s50, 0
      %p195 = por %p193, %p194
      %s196 = ssub.s32 %s51, %s63
      %p197 = scmp.eq.s32.totalorder %s196, 0
      %s199 = sadd.s32 %s198, 1
      %s200 = scalar_select %p197, %s198, %s199
      %p203 = pneg %p197
      %p204 = scmp.eq.s32.totalorder %s44, 15
      %p205 = por %p203, %p204
      %p206 = scmp.ne.s32.totalorder %s198, %s201
      %p207 = scmp.eq.s32.totalorder %s44, 0
      %p208 = por %p206, %p207
      %p209 = scmp.ne.s32.totalorder %s198, %s201
      %p210 = scmp.eq.s32.totalorder %s49, 15
      %p211 = por %p209, %p210
      %p212 = scmp.ne.s32.totalorder %s201, %s202
      %p213 = scmp.eq.s32.totalorder %s49, 0
      %p214 = por %p212, %p213
      %p215 = scmp.ne.s32.totalorder %s201, %s202
      %p216 = scmp.eq.s32.totalorder %s50, 15
      %p217 = por %p215, %p216
      %p219 = scmp.ne.s32.totalorder %s202, %s218
      %p220 = scmp.eq.s32.totalorder %s50, 0
      %p221 = por %p219, %p220
      %s222 = ssub.s32 %s51, %s63
      %p223 = scmp.eq.s32.totalorder %s222, 0
      %s225 = sadd.s32 %s224, 1
      %s226 = scalar_select %p223, %s224, %s225
      %p229 = pneg %p223
      %p230 = scmp.eq.s32.totalorder %s44, 15
      %p231 = por %p229, %p230
      %p232 = scmp.ne.s32.totalorder %s224, %s227
      %p233 = scmp.eq.s32.totalorder %s44, 0
      %p234 = por %p232, %p233
      %p235 = scmp.ne.s32.totalorder %s224, %s227
      %p236 = scmp.eq.s32.totalorder %s49, 15
      %p237 = por %p235, %p236
      %p238 = scmp.ne.s32.totalorder %s227, %s228
      %p239 = scmp.eq.s32.totalorder %s49, 0
      %p240 = por %p238, %p239
      %p241 = scmp.ne.s32.totalorder %s227, %s228
      %p242 = scmp.eq.s32.totalorder %s50, 15
      %p243 = por %p241, %p242
      %p245 = scmp.ne.s32.totalorder %s228, %s244
      %p246 = scmp.eq.s32.totalorder %s50, 0
      %p247 = por %p245, %p246
      %s248 = ssub.s32 %s51, %s63
      %p249 = scmp.eq.s32.totalorder %s248, 0
      %s251 = sadd.s32 %s250, 1
      %s252 = scalar_select %p249, %s250, %s251
      %p255 = pneg %p249
      %p256 = scmp.eq.s32.totalorder %s44, 15
      %p257 = por %p255, %p256
      %p258 = scmp.ne.s32.totalorder %s250, %s253
      %p259 = scmp.eq.s32.totalorder %s44, 0
      %p260 = por %p258, %p259
      %p261 = scmp.ne.s32.totalorder %s250, %s253
      %p262 = scmp.eq.s32.totalorder %s49, 15
      %p263 = por %p261, %p262
      %p264 = scmp.ne.s32.totalorder %s253, %s254
      %p265 = scmp.eq.s32.totalorder %s49, 0
      %p266 = por %p264, %p265
      %p267 = scmp.ne.s32.totalorder %s253, %s254
      %p268 = scmp.eq.s32.totalorder %s50, 15
      %p269 = por %p267, %p268
      %p271 = scmp.ne.s32.totalorder %s254, %s270
      %p272 = scmp.eq.s32.totalorder %s50, 0
      %p273 = por %p271, %p272
      %s274 = ssub.s32 %s51, %s63
      %p275 = scmp.eq.s32.totalorder %s274, 0
      %s277 = sadd.s32 %s276, 1
      %s278 = scalar_select %p275, %s276, %s277
      %p281 = pneg %p275
      %p282 = scmp.eq.s32.totalorder %s44, 15
      %p283 = por %p281, %p282
      %p284 = scmp.ne.s32.totalorder %s276, %s279
      %p285 = scmp.eq.s32.totalorder %s44, 0
      %p286 = por %p284, %p285
      %p287 = scmp.ne.s32.totalorder %s276, %s279
      %p288 = scmp.eq.s32.totalorder %s49, 15
      %p289 = por %p287, %p288
      %p290 = scmp.ne.s32.totalorder %s279, %s280
      %p291 = scmp.eq.s32.totalorder %s49, 0
      %p292 = por %p290, %p291
      %p293 = scmp.ne.s32.totalorder %s279, %s280
      %p294 = scmp.eq.s32.totalorder %s50, 15
      %p295 = por %p293, %p294
      %p297 = scmp.ne.s32.totalorder %s280, %s296
      %p298 = scmp.eq.s32.totalorder %s50, 0
      %p299 = por %p297, %p298
      %s300 = ssub.s32 %s51, %s63
      %p301 = scmp.eq.s32.totalorder %s300, 0
      %s303 = sadd.s32 %s302, 1
      %s304 = scalar_select %p301, %s302, %s303
      %p307 = pneg %p301
      %p308 = scmp.eq.s32.totalorder %s44, 15
      %p309 = por %p307, %p308
      %p310 = scmp.ne.s32.totalorder %s302, %s305
      %p311 = scmp.eq.s32.totalorder %s44, 0
      %p312 = por %p310, %p311
      %p313 = scmp.ne.s32.totalorder %s302, %s305
      %p314 = scmp.eq.s32.totalorder %s49, 15
      %p315 = por %p313, %p314
      %p316 = scmp.ne.s32.totalorder %s305, %s306
      %p317 = scmp.eq.s32.totalorder %s49, 0
      %p318 = por %p316, %p317
      %p319 = scmp.ne.s32.totalorder %s305, %s306
      %p320 = scmp.eq.s32.totalorder %s50, 15
      %p321 = por %p319, %p320
      %p323 = scmp.ne.s32.totalorder %s306, %s322
      %p324 = scmp.eq.s32.totalorder %s50, 0
      %p325 = por %p323, %p324
      %s326 = ssub.s32 %s52, %s59
      %s327 = ssub.s32 %s51, %s63
      %s328 = sor.u32 %s326, %s327
      %p329 = scmp.eq.s32.totalorder %s328, 0
      %s331 = sadd.s32 %s330, 1
      %s332 = scalar_select %p329, %s330, %s331
      %p335 = pneg %p329
      %p336 = scmp.eq.s32.totalorder %s44, 15
      %p337 = por %p335, %p336
      %p338 = scmp.ne.s32.totalorder %s330, %s333
      %p339 = scmp.eq.s32.totalorder %s44, 0
      %p340 = por %p338, %p339
      %p341 = scmp.ne.s32.totalorder %s330, %s333
      %p342 = scmp.eq.s32.totalorder %s49, 15
      %p343 = por %p341, %p342
      %p344 = scmp.ne.s32.totalorder %s333, %s334
      %p345 = scmp.eq.s32.totalorder %s49, 0
      %p346 = por %p344, %p345
      %p347 = scmp.ne.s32.totalorder %s333, %s334
      %p348 = scmp.eq.s32.totalorder %s50, 15
      %p349 = por %p347, %p348
      %p351 = scmp.ne.s32.totalorder %s334, %s350
      %p352 = scmp.eq.s32.totalorder %s50, 0
      %p353 = por %p351, %p352
      %s354 = ssub.s32 %s51, %s63
      %p355 = scmp.eq.s32.totalorder %s354, 0
      %s357 = sadd.s32 %s356, 1
      %s358 = scalar_select %p355, %s356, %s357
      %p361 = pneg %p355
      %p362 = scmp.eq.s32.totalorder %s44, 15
      %p363 = por %p361, %p362
      %p364 = scmp.ne.s32.totalorder %s356, %s359
      %p365 = scmp.eq.s32.totalorder %s44, 0
      %p366 = por %p364, %p365
      %p367 = scmp.ne.s32.totalorder %s356, %s359
      %p368 = scmp.eq.s32.totalorder %s49, 15
      %p369 = por %p367, %p368
      %p370 = scmp.ne.s32.totalorder %s359, %s360
      %p371 = scmp.eq.s32.totalorder %s49, 0
      %p372 = por %p370, %p371
      %p373 = scmp.ne.s32.totalorder %s359, %s360
      %p374 = scmp.eq.s32.totalorder %s50, 15
      %p375 = por %p373, %p374
      %p377 = scmp.ne.s32.totalorder %s360, %s376
      %p378 = scmp.eq.s32.totalorder %s50, 0
      %p379 = por %p377, %p378
      %s380 = ssub.s32 %s51, %s63
      %p381 = scmp.eq.s32.totalorder %s380, 0
      %s383 = sadd.s32 %s382, 1
      %s384 = scalar_select %p381, %s382, %s383
      %p387 = pneg %p381
      %p388 = scmp.eq.s32.totalorder %s44, 15
      %p389 = por %p387, %p388
      %p390 = scmp.ne.s32.totalorder %s382, %s385
      %p391 = scmp.eq.s32.totalorder %s44, 0
      %p392 = por %p390, %p391
      %p393 = scmp.ne.s32.totalorder %s382, %s385
      %p394 = scmp.eq.s32.totalorder %s49, 15
      %p395 = por %p393, %p394
      %p396 = scmp.ne.s32.totalorder %s385, %s386
      %p397 = scmp.eq.s32.totalorder %s49, 0
      %p398 = por %p396, %p397
      %p399 = scmp.ne.s32.totalorder %s385, %s386
      %p400 = scmp.eq.s32.totalorder %s50, 15
      %p401 = por %p399, %p400
      %p403 = scmp.ne.s32.totalorder %s386, %s402
      %p404 = scmp.eq.s32.totalorder %s50, 0
      %p405 = por %p403, %p404
      %s406 = ssub.s32 %s51, %s63
      %p407 = scmp.eq.s32.totalorder %s406, 0
      %s409 = sadd.s32 %s408, 1
      %s410 = scalar_select %p407, %s408, %s409
      %p413 = pneg %p407
      %p414 = scmp.eq.s32.totalorder %s44, 15
      %p415 = por %p413, %p414
      %p416 = scmp.ne.s32.totalorder %s408, %s411
      %p417 = scmp.eq.s32.totalorder %s44, 0
      %p418 = por %p416, %p417
      %p419 = scmp.ne.s32.totalorder %s408, %s411
      %p420 = scmp.eq.s32.totalorder %s49, 15
      %p421 = por %p419, %p420
      %p422 = scmp.ne.s32.totalorder %s411, %s412
      %p423 = scmp.eq.s32.totalorder %s49, 0
      %p424 = por %p422, %p423
      %p425 = scmp.ne.s32.totalorder %s411, %s412
      %p426 = scmp.eq.s32.totalorder %s50, 15
      %p427 = por %p425, %p426
      %p429 = scmp.ne.s32.totalorder %s412, %s428
      %p430 = scmp.eq.s32.totalorder %s50, 0
      %p431 = por %p429, %p430
      %p432 = scmp.le.s32.totalorder 1, %s44
      %p433 = scmp.lt.s32.totalorder %s44, 17
      %p434 = pnand %p432, %p433
      %p435 = pneg %p434
      // Predicated region
      $region9: #{aeif_multistep_padded.1} parent=5 // pred_check
        _
      $region10: #{aeif_multistep_padded.1} parent=5 // pred_check_branch
        %437 = sbr.rel (%p434) target = $region12
      $region11: #{aeif_multistep_padded.1} parent=5 // pred_region
        %s438 = ssub.s32 %s44, 1
      $region12: #{aeif_multistep_padded.1} parent=5 // pred_fallthru
        _
      %p439 = scmp.lt.s32.totalorder %s44, 16
      // Predicated region
      $region13: #{aeif_multistep_padded.1} parent=5 // pred_check
        %p440 = pneg %p439
      $region14: #{aeif_multistep_padded.1} parent=5 // pred_check_branch
        %442 = sbr.rel (%p440) target = $region16
      $region15: #{aeif_multistep_padded.1} parent=5 // pred_region
        // Predicated region
        $region17: #{aeif_multistep_padded.1} parent=15 // pred_check
          %p443 = pneg %p78
        $region18: #{aeif_multistep_padded.1} parent=15 // pred_check_branch
          %445 = sbr.rel (%p443) target = $region20
        $region19: #{aeif_multistep_padded.1} parent=15 // pred_region
          %s446 = sand.u32 %s68, 1
          %s447 = scalar_lea.sflag [#allocation3], %s446
          %s448 = sand.u32 %s68, 1
          %s449 = smul.addr %s448, 8
          %s450 = scalar_lea.vmem [#allocation2], %s449
          %s452 = ssub.s32 128, 128
          %453 = vsyncadd %s447, %s452
          %s454 = smul.addr %s52, 2
          %s455 = sadd.s32 %s51, %s454
          %s456 = smul.addr %s455, 128
          %s457 = scalar_lea.hbm %s0, %s456
          %s459 = sshll.u32 %s450, 4
          %s460 = int_to_ptr.vmem [resolvable:$true] %s459
          %462 = dma.hbm_to_vmem [thread:$0]  %s457, 128, %s460, %s447
        $region20: #{aeif_multistep_padded.1} parent=15 // pred_fallthru
          _
        // Predicated region
        $region21: #{aeif_multistep_padded.1} parent=15 // pred_check
          %p463 = pneg %p104
        $region22: #{aeif_multistep_padded.1} parent=15 // pred_check_branch
          %465 = sbr.rel (%p463) target = $region24
        $region23: #{aeif_multistep_padded.1} parent=15 // pred_region
          %s466 = sand.u32 %s44, 1
          %s467 = scalar_lea.sflag [#allocation6], %s466
          %s468 = sand.u32 %s94, 1
          %s469 = smul.addr %s468, 8
          %s470 = scalar_lea.vmem [#allocation5], %s469
          %s472 = ssub.s32 128, 128
          %473 = vsyncadd %s467, %s472
          %s474 = smul.addr %s51, 128
          %s475 = scalar_lea.hbm %s1, %s474
          %s477 = sshll.u32 %s470, 4
          %s478 = int_to_ptr.vmem [resolvable:$true] %s477
          %480 = dma.hbm_to_vmem [thread:$0]  %s475, 128, %s478, %s467
        $region24: #{aeif_multistep_padded.1} parent=15 // pred_fallthru
          _
        // Predicated region
        $region25: #{aeif_multistep_padded.1} parent=15 // pred_check
          %p481 = pneg %p130
        $region26: #{aeif_multistep_padded.1} parent=15 // pred_check_branch
          %483 = sbr.rel (%p481) target = $region28
        $region27: #{aeif_multistep_padded.1} parent=15 // pred_region
          %p484 = scmp.lt.s32.totalorder %s51, 1
          %s485 = scalar_select %p484, %s51, 1
          %s486 = smul.addr %s485, 8
          %s487 = scalar_lea.vmem %s2, %s486
        $region28: #{aeif_multistep_padded.1} parent=15 // pred_fallthru
          _
        // Predicated region
        $region29: #{aeif_multistep_padded.1} parent=15 // pred_check
          %p488 = pneg %p156
        $region30: #{aeif_multistep_padded.1} parent=15 // pred_check_branch
          %490 = sbr.rel (%p488) target = $region32
        $region31: #{aeif_multistep_padded.1} parent=15 // pred_region
          %s491 = sand.u32 %s44, 1
          %s492 = scalar_lea.sflag [#allocation6], %s491
          %s493 = sand.u32 %s146, 1
          %s494 = smul.addr %s493, 8
          %s495 = scalar_lea.vmem [#allocation7], %s494
          %s497 = ssub.s32 128, 128
          %498 = vsyncadd %s492, %s497
          %s499 = smul.addr %s51, 128
          %s500 = scalar_lea.hbm %s3, %s499
          %s502 = sshll.u32 %s495, 4
          %s503 = int_to_ptr.vmem [resolvable:$true] %s502
          %505 = dma.hbm_to_vmem [thread:$0]  %s500, 128, %s503, %s492
        $region32: #{aeif_multistep_padded.1} parent=15 // pred_fallthru
          _
        // Predicated region
        $region33: #{aeif_multistep_padded.1} parent=15 // pred_check
          %p506 = pneg %p182
        $region34: #{aeif_multistep_padded.1} parent=15 // pred_check_branch
          %508 = sbr.rel (%p506) target = $region36
        $region35: #{aeif_multistep_padded.1} parent=15 // pred_region
          %s509 = sand.u32 %s44, 1
          %s510 = scalar_lea.sflag [#allocation9], %s509
          %s511 = sand.u32 %s172, 1
          %s512 = smul.addr %s511, 8
          %s513 = scalar_lea.vmem [#allocation8], %s512
          %s515 = ssub.s32 128, 128
          %516 = vsyncadd %s510, %s515
          %s517 = smul.addr %s51, 128
          %s518 = scalar_lea.hbm %s4, %s517
          %s520 = sshll.u32 %s513, 4
          %s521 = int_to_ptr.vmem [resolvable:$true] %s520
          %523 = dma.hbm_to_vmem [thread:$0]  %s518, 128, %s521, %s510
        $region36: #{aeif_multistep_padded.1} parent=15 // pred_fallthru
          _
        // Predicated region
        $region37: #{aeif_multistep_padded.1} parent=15 // pred_check
          %p524 = pneg %p208
        $region38: #{aeif_multistep_padded.1} parent=15 // pred_check_branch
          %526 = sbr.rel (%p524) target = $region40
        $region39: #{aeif_multistep_padded.1} parent=15 // pred_region
          %s527 = sand.u32 %s44, 1
          %s528 = scalar_lea.sflag [#allocation9], %s527
          %s529 = sand.u32 %s198, 1
          %s530 = smul.addr %s529, 8
          %s531 = scalar_lea.vmem [#allocation10], %s530
          %s533 = ssub.s32 128, 128
          %534 = vsyncadd %s528, %s533
          %s535 = smul.addr %s51, 128
          %s536 = scalar_lea.hbm %s5, %s535
          %s538 = sshll.u32 %s531, 4
          %s539 = int_to_ptr.vmem [resolvable:$true] %s538
          %541 = dma.hbm_to_vmem [thread:$0]  %s536, 128, %s539, %s528
        $region40: #{aeif_multistep_padded.1} parent=15 // pred_fallthru
          _
        // Predicated region
        $region41: #{aeif_multistep_padded.1} parent=15 // pred_check
          %p542 = pneg %p234
        $region42: #{aeif_multistep_padded.1} parent=15 // pred_check_branch
          %544 = sbr.rel (%p542) target = $region44
        $region43: #{aeif_multistep_padded.1} parent=15 // pred_region
          %p545 = scmp.lt.s32.totalorder %s51, 1
          %s546 = scalar_select %p545, %s51, 1
          %s547 = smul.addr %s546, 8
          %s548 = scalar_lea.vmem %s6, %s547
        $region44: #{aeif_multistep_padded.1} parent=15 // pred_fallthru
          _
        // Predicated region
        $region45: #{aeif_multistep_padded.1} parent=15 // pred_check
          %p549 = pneg %p260
        $region46: #{aeif_multistep_padded.1} parent=15 // pred_check_branch
          %551 = sbr.rel (%p549) target = $region48
        $region47: #{aeif_multistep_padded.1} parent=15 // pred_region
          %s552 = sand.u32 %s44, 1
          %s553 = scalar_lea.sflag [#allocation12], %s552
          %s554 = sand.u32 %s250, 1
          %s555 = smul.addr %s554, 8
          %s556 = scalar_lea.vmem [#allocation11], %s555
          %s558 = ssub.s32 128, 128
          %559 = vsyncadd %s553, %s558
          %s560 = smul.addr %s51, 128
          %s561 = scalar_lea.hbm %s7, %s560
          %s563 = sshll.u32 %s556, 4
          %s564 = int_to_ptr.vmem [resolvable:$true] %s563
          %566 = dma.hbm_to_vmem [thread:$0]  %s561, 128, %s564, %s553
        $region48: #{aeif_multistep_padded.1} parent=15 // pred_fallthru
          _
        // Predicated region
        $region49: #{aeif_multistep_padded.1} parent=15 // pred_check
          %p567 = pneg %p286
        $region50: #{aeif_multistep_padded.1} parent=15 // pred_check_branch
          %569 = sbr.rel (%p567) target = $region52
        $region51: #{aeif_multistep_padded.1} parent=15 // pred_region
          %s570 = sand.u32 %s44, 1
          %s571 = scalar_lea.sflag [#allocation12], %s570
          %s572 = sand.u32 %s276, 1
          %s573 = smul.addr %s572, 8
          %s574 = scalar_lea.vmem [#allocation13], %s573
          %s576 = ssub.s32 128, 128
          %577 = vsyncadd %s571, %s576
          %s578 = smul.addr %s51, 128
          %s579 = scalar_lea.hbm %s8, %s578
          %s581 = sshll.u32 %s574, 4
          %s582 = int_to_ptr.vmem [resolvable:$true] %s581
          %584 = dma.hbm_to_vmem [thread:$0]  %s579, 128, %s582, %s571
        $region52: #{aeif_multistep_padded.1} parent=15 // pred_fallthru
          _
        // Predicated region
        $region53: #{aeif_multistep_padded.1} parent=15 // pred_check
          %p585 = pneg %p312
        $region54: #{aeif_multistep_padded.1} parent=15 // pred_check_branch
          %587 = sbr.rel (%p585) target = $region56
        $region55: #{aeif_multistep_padded.1} parent=15 // pred_region
          %s588 = sand.u32 %s302, 1
          %s589 = scalar_lea.sflag [#allocation15], %s588
          %s590 = sand.u32 %s302, 1
          %s591 = smul.addr %s590, 8
          %s592 = scalar_lea.vmem [#allocation14], %s591
          %s594 = ssub.s32 128, 128
          %595 = vsyncadd %s589, %s594
          %s596 = smul.addr %s51, 128
          %s597 = scalar_lea.hbm %s9, %s596
          %s599 = sshll.u32 %s592, 4
          %s600 = int_to_ptr.vmem [resolvable:$true] %s599
          %602 = dma.hbm_to_vmem [thread:$0]  %s597, 128, %s600, %s589
        $region56: #{aeif_multistep_padded.1} parent=15 // pred_fallthru
          _
      $region16: #{aeif_multistep_padded.1} parent=5 // pred_fallthru
        _
      %p603 = scmp.le.s32.totalorder 1, %s44
      %p604 = scmp.lt.s32.totalorder %s44, 17
      %p605 = pnand %p603, %p604
      %p606 = pneg %p605
      // Predicated region
      $region57: #{aeif_multistep_padded.1} parent=5 // pred_check
        _
      $region58: #{aeif_multistep_padded.1} parent=5 // pred_check_branch
        %608 = sbr.rel (%p605) target = $region60
      $region59: #{aeif_multistep_padded.1} parent=5 // pred_region
        %s609 = ssub.s32 %s44, 1
        %s610 = sand.u32 %s71, 1
        %s611 = scalar_lea.sflag [#allocation3], %s610
        %s612 = sand.u32 %s71, 1
        %s613 = smul.addr %s612, 8
        %s614 = scalar_lea.vmem [#allocation2], %s613
        // Predicated region
        $region61: #{aeif_multistep_padded.1} parent=59 // pred_check
          %p615 = pneg %p84
        $region62: #{aeif_multistep_padded.1} parent=59 // pred_check_branch
          %617 = sbr.rel (%p615) target = $region64
        $region63: #{aeif_multistep_padded.1} parent=59 // pred_region
          %618 = dma.done %s611, 128
        $region64: #{aeif_multistep_padded.1} parent=59 // pred_fallthru
          _
        %s619 = sand.u32 %s49, 1
        %s620 = scalar_lea.sflag [#allocation6], %s619
        %s621 = sand.u32 %s97, 1
        %s622 = smul.addr %s621, 8
        %s623 = scalar_lea.vmem [#allocation5], %s622
        // Predicated region
        $region65: #{aeif_multistep_padded.1} parent=59 // pred_check
          %p624 = pneg %p110
        $region66: #{aeif_multistep_padded.1} parent=59 // pred_check_branch
          %626 = sbr.rel (%p624) target = $region68
        $region67: #{aeif_multistep_padded.1} parent=59 // pred_region
          %627 = dma.done %s620, 128
        $region68: #{aeif_multistep_padded.1} parent=59 // pred_fallthru
          _
        %s628 = sand.u32 %s49, 1
        %s629 = scalar_lea.sflag [#allocation6], %s628
        %s630 = sand.u32 %s149, 1
        %s631 = smul.addr %s630, 8
        %s632 = scalar_lea.vmem [#allocation7], %s631
        // Predicated region
        $region69: #{aeif_multistep_padded.1} parent=59 // pred_check
          %p633 = pneg %p162
        $region70: #{aeif_multistep_padded.1} parent=59 // pred_check_branch
          %635 = sbr.rel (%p633) target = $region72
        $region71: #{aeif_multistep_padded.1} parent=59 // pred_region
          %636 = dma.done %s629, 128
        $region72: #{aeif_multistep_padded.1} parent=59 // pred_fallthru
          _
        %s637 = sand.u32 %s49, 1
        %s638 = scalar_lea.sflag [#allocation9], %s637
        %s639 = sand.u32 %s175, 1
        %s640 = smul.addr %s639, 8
        %s641 = scalar_lea.vmem [#allocation8], %s640
        // Predicated region
        $region73: #{aeif_multistep_padded.1} parent=59 // pred_check
          %p642 = pneg %p188
        $region74: #{aeif_multistep_padded.1} parent=59 // pred_check_branch
          %644 = sbr.rel (%p642) target = $region76
        $region75: #{aeif_multistep_padded.1} parent=59 // pred_region
          %645 = dma.done %s638, 128
        $region76: #{aeif_multistep_padded.1} parent=59 // pred_fallthru
          _
        %s646 = sand.u32 %s49, 1
        %s647 = scalar_lea.sflag [#allocation9], %s646
        %s648 = sand.u32 %s201, 1
        %s649 = smul.addr %s648, 8
        %s650 = scalar_lea.vmem [#allocation10], %s649
        // Predicated region
        $region77: #{aeif_multistep_padded.1} parent=59 // pred_check
          %p651 = pneg %p214
        $region78: #{aeif_multistep_padded.1} parent=59 // pred_check_branch
          %653 = sbr.rel (%p651) target = $region80
        $region79: #{aeif_multistep_padded.1} parent=59 // pred_region
          %654 = dma.done %s647, 128
        $region80: #{aeif_multistep_padded.1} parent=59 // pred_fallthru
          _
        %s655 = sand.u32 %s49, 1
        %s656 = scalar_lea.sflag [#allocation12], %s655
        %s657 = sand.u32 %s253, 1
        %s658 = smul.addr %s657, 8
        %s659 = scalar_lea.vmem [#allocation11], %s658
        // Predicated region
        $region81: #{aeif_multistep_padded.1} parent=59 // pred_check
          %p660 = pneg %p266
        $region82: #{aeif_multistep_padded.1} parent=59 // pred_check_branch
          %662 = sbr.rel (%p660) target = $region84
        $region83: #{aeif_multistep_padded.1} parent=59 // pred_region
          %663 = dma.done %s656, 128
        $region84: #{aeif_multistep_padded.1} parent=59 // pred_fallthru
          _
        %s664 = sand.u32 %s49, 1
        %s665 = scalar_lea.sflag [#allocation12], %s664
        %s666 = sand.u32 %s279, 1
        %s667 = smul.addr %s666, 8
        %s668 = scalar_lea.vmem [#allocation13], %s667
        // Predicated region
        $region85: #{aeif_multistep_padded.1} parent=59 // pred_check
          %p669 = pneg %p292
        $region86: #{aeif_multistep_padded.1} parent=59 // pred_check_branch
          %671 = sbr.rel (%p669) target = $region88
        $region87: #{aeif_multistep_padded.1} parent=59 // pred_region
          %672 = dma.done %s665, 128
        $region88: #{aeif_multistep_padded.1} parent=59 // pred_fallthru
          _
        %s673 = sand.u32 %s305, 1
        %s674 = scalar_lea.sflag [#allocation15], %s673
        %s675 = sand.u32 %s305, 1
        %s676 = smul.addr %s675, 8
        %s677 = scalar_lea.vmem [#allocation14], %s676
        // Predicated region
        $region89: #{aeif_multistep_padded.1} parent=59 // pred_check
          %p678 = pneg %p318
        $region90: #{aeif_multistep_padded.1} parent=59 // pred_check_branch
          %680 = sbr.rel (%p678) target = $region92
        $region91: #{aeif_multistep_padded.1} parent=59 // pred_region
          %681 = dma.done %s674, 128
        $region92: #{aeif_multistep_padded.1} parent=59 // pred_fallthru
          _
        %s682 = sand.u32 %s71, 1
        %s683 = scalar_lea.sflag [#allocation3], %s682
        %s684 = sand.u32 %s71, 1
        %s685 = smul.addr %s684, 8
        %s686 = scalar_lea.vmem [#allocation2], %s685
        %p687 = pneg %p84
        %p688 = pneg %p81
        %s689 = sand.u32 %s49, 1
        %s690 = scalar_lea.sflag [#allocation6], %s689
        %s691 = sand.u32 %s97, 1
        %s692 = smul.addr %s691, 8
        %s693 = scalar_lea.vmem [#allocation5], %s692
        %p694 = pneg %p110
        %p695 = pneg %p107
        %p696 = scmp.lt.s32.totalorder %s53, 1
        %s697 = scalar_select %p696, %s53, 1
        %s698 = smul.addr %s697, 8
        %s699 = scalar_lea.vmem %s2, %s698
        %p700 = pneg %p136
        %p701 = pneg %p133
        %s702 = sand.u32 %s49, 1
        %s703 = scalar_lea.sflag [#allocation6], %s702
        %s704 = sand.u32 %s149, 1
        %s705 = smul.addr %s704, 8
        %s706 = scalar_lea.vmem [#allocation7], %s705
        %p707 = pneg %p162
        %p708 = pneg %p159
        %s709 = sand.u32 %s49, 1
        %s710 = scalar_lea.sflag [#allocation9], %s709
        %s711 = sand.u32 %s175, 1
        %s712 = smul.addr %s711, 8
        %s713 = scalar_lea.vmem [#allocation8], %s712
        %p714 = pneg %p188
        %p715 = pneg %p185
        %s716 = sand.u32 %s49, 1
        %s717 = scalar_lea.sflag [#allocation9], %s716
        %s718 = sand.u32 %s201, 1
        %s719 = smul.addr %s718, 8
        %s720 = scalar_lea.vmem [#allocation10], %s719
        %p721 = pneg %p214
        %p722 = pneg %p211
        %p723 = scmp.lt.s32.totalorder %s53, 1
        %s724 = scalar_select %p723, %s53, 1
        %s725 = smul.addr %s724, 8
        %s726 = scalar_lea.vmem %s6, %s725
        %p727 = pneg %p240
        %p728 = pneg %p237
        %s729 = sand.u32 %s49, 1
        %s730 = scalar_lea.sflag [#allocation12], %s729
        %s731 = sand.u32 %s253, 1
        %s732 = smul.addr %s731, 8
        %s733 = scalar_lea.vmem [#allocation11], %s732
        %p734 = pneg %p266
        %p735 = pneg %p263
        %s736 = sand.u32 %s49, 1
        %s737 = scalar_lea.sflag [#allocation12], %s736
        %s738 = sand.u32 %s279, 1
        %s739 = smul.addr %s738, 8
        %s740 = scalar_lea.vmem [#allocation13], %s739
        %p741 = pneg %p292
        %p742 = pneg %p289
        %s743 = sand.u32 %s305, 1
        %s744 = scalar_lea.sflag [#allocation15], %s743
        %s745 = sand.u32 %s305, 1
        %s746 = smul.addr %s745, 8
        %s747 = scalar_lea.vmem [#allocation14], %s746
        %p748 = pneg %p318
        %p749 = pneg %p315
        %p750 = pneg %p346
        %p751 = pneg %p343
        %s752 = sand.u32 %s333, 1
        %s753 = scalar_lea.sflag [#allocation4], %s752
        %s754 = sand.u32 %s333, 1
        %s755 = smul.addr %s754, 8
        %s756 = scalar_lea.vmem [#allocation16], %s755
        %p757 = pneg %p372
        %p758 = pneg %p369
        %s759 = sand.u32 %s49, 1
        %s760 = scalar_lea.sflag [#allocation18], %s759
        %s761 = sand.u32 %s359, 1
        %s762 = smul.addr %s761, 8
        %s763 = scalar_lea.vmem [#allocation17], %s762
        %p764 = pneg %p398
        %p765 = pneg %p395
        %s766 = sand.u32 %s49, 1
        %s767 = scalar_lea.sflag [#allocation18], %s766
        %s768 = sand.u32 %s385, 1
        %s769 = smul.addr %s768, 8
        %s770 = scalar_lea.vmem [#allocation19], %s769
        %p771 = pneg %p424
        %p772 = pneg %p421
        %s773 = sand.u32 %s411, 1
        %s774 = scalar_lea.sflag [#allocation21], %s773
        %s775 = sand.u32 %s411, 1
        %s776 = smul.addr %s775, 8
        %s777 = scalar_lea.vmem [#allocation20], %s776
        %p778 = scmp.lt.s32.totalorder %s53, 1
        %s779 = scalar_select %p778, %s53, 1
        %s780 = smul.addr %s779, 8
        %s781 = scalar_lea.vmem %s2, %s780
        %p782 = scmp.lt.s32.totalorder %s53, 1
        %s783 = scalar_select %p782, %s53, 1
        %s784 = smul.addr %s783, 8
        %s785 = scalar_lea.vmem %s6, %s784
        %p786 = scmp.eq.s32.totalorder %s54, 0
        // Predicated region
        $region93: #{aeif_multistep_padded.1} parent=59 // pred_check
          %p787 = pneg %p786
        $region94: #{aeif_multistep_padded.1} parent=59 // pred_check_branch
          %789 = sbr.rel (%p787) target = $region96
        $region95: #{aeif_multistep_padded.1} parent=59 // pred_region
          %v790 = vld [vmem:[%s659] sm:$0xff]
          %791 = vst [vmem:[%s763] sm:$0xff] %v790
          %v792 = vld [vmem:[%s668] sm:$0xff]
          %793 = vst [vmem:[%s770] sm:$0xff] %v792
          %v794 = vld [vmem:[%s677] sm:$0xff]
          %795 = vst [vmem:[%s777] sm:$0xff] %v794
        $region96: #{aeif_multistep_padded.1} parent=59 // pred_fallthru
          _
        %v796 = vld [vmem:[%s614] sm:$0xff]
        %v797 = vld [vmem:[%s763] sm:$0xff]
        %v798 = vld [vmem:[%s770] sm:$0xff]
        %v799 = vld [vmem:[%s777] sm:$0xff]
        %v800 = vld [vmem:[%s623] sm:$0xff]
        %v801 = vld [vmem:[%s781] sm:$0xff]
        %v802 = vld [vmem:[%s632] sm:$0xff]
        %v803 = vld [vmem:[%s641] sm:$0xff]
        %v804 = vld [vmem:[%s650] sm:$0xff]
        %v805 = vld [vmem:[%s785] sm:$0xff]
        %vm806 = vcmp.gt.f32.partialorder %v799, 5.0
        %v807 = vsel %vm806, 1, 0
        %v808 = vcvt.s32.f32 %v807
        %v809 = vsub.f32 %v797, %v801
        %v810 = vmul.f32 %v809, -0.1
        %v811 = vsub.f32 %v797, %v800
        %v812 = vmul.f32 %v811, 2.0
        %v813 = vmul.f32 %v812, 1.442695
        %v814 = vpow.pop %v813
        %v815 = vmul.f32 %v814, 0.05
        %v816 = vadd.f32 %v810, %v815
        %v817 = vmul.f32 %v804, %v798
        %v818 = vadd.f32 %v816, %v817
        %v819 = vadd.f32 %v818, %v796
        %v820 = vmul.f32 %v802, %v819
        %v821 = vmul.f32 %v808, %v820
        %v822 = vadd.f32 %v797, %v821
        %v823 = vsub.f32 0.0, %v798
        %v824 = vsub.f32 %v822, %v801
        %v825 = vmul.f32 %v805, %v824
        %v826 = vadd.f32 %v823, %v825
        %v827 = vmul.f32 %v803, %v826
        %v828 = vmul.f32 %v808, %v827
        %v829 = vadd.f32 %v798, %v828
        %vm830 = vcmp.gt.f32.partialorder %v822, %v800
        %v831 = vsel %vm830, 1, 0
        %v832 = vcvt.s32.f32 %v831
        %v833 = vsub.f32 1.0, %v832
        %v834 = vmul.f32 %v799, %v833
        %v835 = vadd.f32 %v834, 1.0
        %v836 = vmul.f32 %v832, 30.0
        %v837 = vadd.f32 %v829, %v836
        %v838 = vmul.f32 %v832, %v801
        %v839 = vmul.f32 %v833, %v822
        %v840 = vadd.f32 %v838, %v839
        %841 = vst [vmem:[%s756] sm:$0xff] %v832
        %842 = vst [vmem:[%s763] sm:$0xff] %v840
        %843 = vst [vmem:[%s770] sm:$0xff] %v837
        %844 = vst [vmem:[%s777] sm:$0xff] %v835
        %s845 = sand.u32 %s333, 1
        %s846 = scalar_lea.sflag [#allocation4], %s845
        %s847 = sand.u32 %s333, 1
        %s848 = smul.addr %s847, 8
        %s849 = scalar_lea.vmem [#allocation16], %s848
        %s850 = sand.u32 %s49, 1
        %s851 = scalar_lea.sflag [#allocation18], %s850
        %s852 = sand.u32 %s359, 1
        %s853 = smul.addr %s852, 8
        %s854 = scalar_lea.vmem [#allocation17], %s853
        %s855 = sand.u32 %s49, 1
        %s856 = scalar_lea.sflag [#allocation18], %s855
        %s857 = sand.u32 %s385, 1
        %s858 = smul.addr %s857, 8
        %s859 = scalar_lea.vmem [#allocation19], %s858
        %s860 = sand.u32 %s411, 1
        %s861 = scalar_lea.sflag [#allocation21], %s860
        %s862 = sand.u32 %s411, 1
        %s863 = smul.addr %s862, 8
        %s864 = scalar_lea.vmem [#allocation20], %s863
        // Predicated region
        $region97: #{aeif_multistep_padded.1} parent=59 // pred_check
          %p865 = pneg %p343
        $region98: #{aeif_multistep_padded.1} parent=59 // pred_check_branch
          %867 = sbr.rel (%p865) target = $region100
        $region99: #{aeif_multistep_padded.1} parent=59 // pred_region
          %s869 = ssub.s32 128, 128
          %870 = vsyncadd %s846, %s869
          %s871 = smul.addr %s54, 2
          %s872 = sadd.s32 %s53, %s871
          %s873 = smul.addr %s872, 128
          %s874 = scalar_lea.hbm %s10, %s873
          %s876 = sshll.u32 %s849, 4
          %s877 = int_to_ptr.vmem [resolvable:$true] %s876
          %879 = dma.vmem_to_hbm [thread:$0]  %s877, 128, %s874, %s846
        $region100: #{aeif_multistep_padded.1} parent=59 // pred_fallthru
          _
        // Predicated region
        $region101: #{aeif_multistep_padded.1} parent=59 // pred_check
          %p880 = pneg %p369
        $region102: #{aeif_multistep_padded.1} parent=59 // pred_check_branch
          %882 = sbr.rel (%p880) target = $region104
        $region103: #{aeif_multistep_padded.1} parent=59 // pred_region
          %s884 = ssub.s32 128, 128
          %885 = vsyncadd %s851, %s884
          %s886 = smul.addr %s53, 128
          %s887 = scalar_lea.hbm %s11, %s886
          %s889 = sshll.u32 %s854, 4
          %s890 = int_to_ptr.vmem [resolvable:$true] %s889
          %892 = dma.vmem_to_hbm [thread:$0]  %s890, 128, %s887, %s851
        $region104: #{aeif_multistep_padded.1} parent=59 // pred_fallthru
          _
        // Predicated region
        $region105: #{aeif_multistep_padded.1} parent=59 // pred_check
          %p893 = pneg %p395
        $region106: #{aeif_multistep_padded.1} parent=59 // pred_check_branch
          %895 = sbr.rel (%p893) target = $region108
        $region107: #{aeif_multistep_padded.1} parent=59 // pred_region
          %s897 = ssub.s32 128, 128
          %898 = vsyncadd %s856, %s897
          %s899 = smul.addr %s53, 128
          %s900 = scalar_lea.hbm %s12, %s899
          %s902 = sshll.u32 %s859, 4
          %s903 = int_to_ptr.vmem [resolvable:$true] %s902
          %905 = dma.vmem_to_hbm [thread:$0]  %s903, 128, %s900, %s856
        $region108: #{aeif_multistep_padded.1} parent=59 // pred_fallthru
          _
        // Predicated region
        $region109: #{aeif_multistep_padded.1} parent=59 // pred_check
          %p906 = pneg %p421
        $region110: #{aeif_multistep_padded.1} parent=59 // pred_check_branch
          %908 = sbr.rel (%p906) target = $region112
        $region111: #{aeif_multistep_padded.1} parent=59 // pred_region
          %s910 = ssub.s32 128, 128
          %911 = vsyncadd %s861, %s910
          %s912 = smul.addr %s53, 128
          %s913 = scalar_lea.hbm %s13, %s912
          %s915 = sshll.u32 %s864, 4
          %s916 = int_to_ptr.vmem [resolvable:$true] %s915
          %918 = dma.vmem_to_hbm [thread:$0]  %s916, 128, %s913, %s861
        $region112: #{aeif_multistep_padded.1} parent=59 // pred_fallthru
          _
      $region60: #{aeif_multistep_padded.1} parent=5 // pred_fallthru
        _
      %p919 = scmp.le.s32.totalorder 2, %s44
      // Predicated region
      $region113: #{aeif_multistep_padded.1} parent=5 // pred_check
        %p920 = pneg %p919
      $region114: #{aeif_multistep_padded.1} parent=5 // pred_check_branch
        %922 = sbr.rel (%p920) target = $region116
      $region115: #{aeif_multistep_padded.1} parent=5 // pred_region
        %s923 = ssub.s32 %s44, 2
        // Predicated region
        $region117: #{aeif_multistep_padded.1} parent=115 // pred_check
          %p924 = pneg %p349
        $region118: #{aeif_multistep_padded.1} parent=115 // pred_check_branch
          %926 = sbr.rel (%p924) target = $region120
        $region119: #{aeif_multistep_padded.1} parent=115 // pred_region
          %s927 = sand.u32 %s334, 1
          %s928 = scalar_lea.sflag [#allocation4], %s927
          %s929 = sand.u32 %s334, 1
          %s930 = smul.addr %s929, 8
          %s931 = scalar_lea.vmem [#allocation16], %s930
          %932 = dma.done %s928, 128
        $region120: #{aeif_multistep_padded.1} parent=115 // pred_fallthru
          _
        // Predicated region
        $region121: #{aeif_multistep_padded.1} parent=115 // pred_check
          %p933 = pneg %p375
        $region122: #{aeif_multistep_padded.1} parent=115 // pred_check_branch
          %935 = sbr.rel (%p933) target = $region124
        $region123: #{aeif_multistep_padded.1} parent=115 // pred_region
          %s936 = sand.u32 %s50, 1
          %s937 = scalar_lea.sflag [#allocation18], %s936
          %s938 = sand.u32 %s360, 1
          %s939 = smul.addr %s938, 8
          %s940 = scalar_lea.vmem [#allocation17], %s939
          %941 = dma.done %s937, 128
        $region124: #{aeif_multistep_padded.1} parent=115 // pred_fallthru
          _
        // Predicated region
        $region125: #{aeif_multistep_padded.1} parent=115 // pred_check
          %p942 = pneg %p401
        $region126: #{aeif_multistep_padded.1} parent=115 // pred_check_branch
          %944 = sbr.rel (%p942) target = $region128
        $region127: #{aeif_multistep_padded.1} parent=115 // pred_region
          %s945 = sand.u32 %s50, 1
          %s946 = scalar_lea.sflag [#allocation18], %s945
          %s947 = sand.u32 %s386, 1
          %s948 = smul.addr %s947, 8
          %s949 = scalar_lea.vmem [#allocation19], %s948
          %950 = dma.done %s946, 128
        $region128: #{aeif_multistep_padded.1} parent=115 // pred_fallthru
          _
        // Predicated region
        $region129: #{aeif_multistep_padded.1} parent=115 // pred_check
          %p951 = pneg %p427
        $region130: #{aeif_multistep_padded.1} parent=115 // pred_check_branch
          %953 = sbr.rel (%p951) target = $region132
        $region131: #{aeif_multistep_padded.1} parent=115 // pred_region
          %s954 = sand.u32 %s412, 1
          %s955 = scalar_lea.sflag [#allocation21], %s954
          %s956 = sand.u32 %s412, 1
          %s957 = smul.addr %s956, 8
          %s958 = scalar_lea.vmem [#allocation20], %s957
          %959 = dma.done %s955, 128
        $region132: #{aeif_multistep_padded.1} parent=115 // pred_fallthru
          _
      $region116: #{aeif_multistep_padded.1} parent=5 // pred_fallthru
        _
    $region6: #{aeif_multistep_padded.1} parent=1 // loop_footer
      %s48 = sadd.s32 1, %s44
    $region7: #{aeif_multistep_padded.1} parent=1 // loop_footer_branch
      %43 = sbr.rel target = $region3
    $region8: #{aeif_multistep_padded.1} parent=1 // loop_exit
      _
    %960 = vsyncpa [#allocation3], 1
    %s961 = scalar_lea.sflag [#allocation3], 1
    %962 = vsyncpa %s961, 1
    %963 = vsyncpa [#allocation6], 1
    %s964 = scalar_lea.sflag [#allocation6], 1
    %965 = vsyncpa %s964, 1
    %966 = vsyncpa [#allocation9], 1
    %s967 = scalar_lea.sflag [#allocation9], 1
    %968 = vsyncpa %s967, 1
    %969 = vsyncpa [#allocation12], 1
    %s970 = scalar_lea.sflag [#allocation12], 1
    %971 = vsyncpa %s970, 1
    %972 = vsyncpa [#allocation15], 1
    %s973 = scalar_lea.sflag [#allocation15], 1
    %974 = vsyncpa %s973, 1
    %975 = vsyncpa [#allocation4], 1
    %s976 = scalar_lea.sflag [#allocation4], 1
    %977 = vsyncpa %s976, 1
    %978 = vsyncpa [#allocation18], 1
    %s979 = scalar_lea.sflag [#allocation18], 1
    %980 = vsyncpa %s979, 1
    %981 = vsyncpa [#allocation21], 1
    %s982 = scalar_lea.sflag [#allocation21], 1
    %983 = vsyncpa %s982, 1

</llo_original>
